<compile_context>
chip_gen: v6e
topology: v6e:2x2x1
jax: 0.10.0
libtpu: 0.0.40
codegen_flags: <defaults>
</compile_context>

<pallas_src>
import jax
import jax.numpy as jnp
from jax.experimental import pallas as pl
from jax.experimental.pallas import tpu as pltpu

HIDDEN = 256


# ---------------------------------------------------------------------------
# Kernel
# ---------------------------------------------------------------------------
def critic_kernel(
    s_ref, a_ref,
    w1s_ref, w1a_ref, b1_ref,
    w2_ref, b2_ref,
    w3_ref, b3a_ref, b3b_ref,
    q1_ref, q2_ref,
):
    # ---- Layer 1: both heads fused along the output dim (width 512). ------
    # concat(s, a) is folded into two dots against the pre-split weight
    # halves, so no wrapper-side concatenate / extra HBM round trip.
    s = s_ref[...].astype(jnp.bfloat16)
    a = a_ref[...].astype(jnp.bfloat16)
    h1 = (
        jnp.dot(s, w1s_ref[...], preferred_element_type=jnp.float32)
        + jnp.dot(a, w1a_ref[...], preferred_element_type=jnp.float32)
        + b1_ref[...]
    )
    h1 = jnp.maximum(h1, 0.0).astype(jnp.bfloat16)            # (TB, 512)

    # ---- Layer 2: two independent 256x256 dots.  Weights are packed into a
    # single (512, 256) resident buffer; static slices at row 256 are free. --
    ha = (
        jnp.dot(h1[:, :HIDDEN], w2_ref[:HIDDEN, :],
                preferred_element_type=jnp.float32)
        + b2_ref[:, :HIDDEN]
    )
    hb = (
        jnp.dot(h1[:, HIDDEN:], w2_ref[HIDDEN:, :],
                preferred_element_type=jnp.float32)
        + b2_ref[:, HIDDEN:]
    )
    ha = jnp.maximum(ha, 0.0).astype(jnp.bfloat16)             # (TB, 256)
    hb = jnp.maximum(hb, 0.0).astype(jnp.bfloat16)             # (TB, 256)

    # ---- Layer 3: per-head K=256 dots, direct stores (no block-diag w3,
    # no (TB, 512) concatenate temp). ---------------------------------------
    q1_ref[...] = (
        jnp.dot(ha, w3_ref[:HIDDEN, :], preferred_element_type=jnp.float32)
        + b3a_ref[...]
    )
    q2_ref[...] = (
        jnp.dot(hb, w3_ref[HIDDEN:, :], preferred_element_type=jnp.float32)
        + b3b_ref[...]
    )


# ---------------------------------------------------------------------------
# Parameter packing (done once, outside the hot path)
# ---------------------------------------------------------------------------
def pack_params(params, state_dim):
    """Fuse twin-head weights and cast matmul operands to bf16.

    Layer 1: concat along out-dim -> (S+A, 512), split into S-rows / A-rows
             halves so the kernel never slices an input ref along K.
    Layer 2: w2a / w2b stacked vertically -> one (512, 256) bf16 blob.
    Layer 3: w3a / w3b stacked vertically -> one (512, A_n) bf16 blob.
    Biases stay f32 (bias-add / ReLU run on the VPU in f32).
    """
    bf16 = jnp.bfloat16
    w1 = jnp.concatenate([params["w1a"], params["w1b"]], axis=1)      # (S+A, 512)
    return {
        "w1s": w1[:state_dim].astype(bf16),                            # (S, 512)
        "w1a": w1[state_dim:].astype(bf16),                            # (A, 512)
        "b1": jnp.concatenate([params["b1a"], params["b1b"]], axis=1)
              .astype(jnp.float32),                                    # (1, 512)
        "w2": jnp.concatenate([params["w2a"], params["w2b"]], axis=0)
              .astype(bf16),                                           # (512, 256)
        "b2": jnp.concatenate([params["b2a"], params["b2b"]], axis=1)
              .astype(jnp.float32),                                    # (1, 512)
        "w3": jnp.concatenate([params["w3a"], params["w3b"]], axis=0)
              .astype(bf16),                                           # (512, A_n)
        "b3a": params["b3a"].astype(jnp.float32),                      # (1, A_n)
        "b3b": params["b3b"].astype(jnp.float32),                      # (1, A_n)
    }


# ---------------------------------------------------------------------------
# Forward wrapper
# ---------------------------------------------------------------------------
def _round_up(x, m):
    return (x + m - 1) // m * m


def critic_forward(s, a, packed, *, block_b=2048, min_split=512):
    """s: (B, S), a: (B, A), packed: output of pack_params.
    Returns (q1, q2), each (B, action_number), float32."""
    B, S = s.shape
    A = a.shape[1]
    an = packed["w3"].shape[1]          # action_number

    # --- Batch tiling -------------------------------------------------------
    # tb is always either == B (full-array block) or a multiple of 8, so the
    # (8,128) BlockSpec rule holds for any caller-supplied block_b.
    block_b = max(8, (int(block_b) // 8) * 8)
    if B <= min_split:
        tb = B                                        # small batch: one block
    elif B <= block_b:
        tb = _round_up(-(-B // 2), 8)                 # >=2 blocks: both v7x TCs
    else:
        tb = block_b                                  # big batch: fat tiles
    nb = pl.cdiv(B, tb)                               # partial last block OK:
    # Pallas masks stores past B; garbage rows never reach the output.

    def batch_spec(feat):
        return pl.BlockSpec((tb, feat), lambda i: (i, 0))

    def resident(arr):
        # Same block index every grid step -> stays in VMEM, no re-DMA.
        return pl.BlockSpec(arr.shape, lambda i: (0, 0))

    operands = (
        s, a,
        packed["w1s"], packed["w1a"], packed["b1"],
        packed["w2"], packed["b2"],
        packed["w3"], packed["b3a"], packed["b3b"],
    )
    in_specs = [batch_spec(S), batch_spec(A)] + [resident(op) for op in operands[2:]]

    weight_bytes = sum(
        int(packed[k].size) * packed[k].dtype.itemsize
        for k in ("w1s", "w1a", "b1", "w2", "b2", "w3", "b3a", "b3b"))
    cost = pl.CostEstimate(
        flops=2 * B * ((S + A) * 2 * HIDDEN + 2 * HIDDEN * HIDDEN + 2 * HIDDEN * an),
        transcendentals=0,
        bytes_accessed=B * (S + A) * 4 + 2 * B * an * 4 + weight_bytes,
    )

    q1, q2 = pl.pallas_call(
        critic_kernel,
        grid=(nb,),
        in_specs=in_specs,
        out_specs=(
            pl.BlockSpec((tb, an), lambda i: (i, 0)),
            pl.BlockSpec((tb, an), lambda i: (i, 0)),
        ),
        out_shape=(
            jax.ShapeDtypeStruct((B, an), jnp.float32),
            jax.ShapeDtypeStruct((B, an), jnp.float32),
        ),
        compiler_params=pltpu.CompilerParams(
            dimension_semantics=("parallel",),       # v7x: 2 TCs split the batch
            vmem_limit_bytes=32 * 1024 * 1024,       # headroom for tb=2048 on v5e
        ),
        cost_estimate=cost,
    )(*operands)

    return q1, q2


# ---------------------------------------------------------------------------
# Synthetic init + reference (mirrors the kernel's bf16 matmul precision)
# ---------------------------------------------------------------------------
def init_params(key, state_dim, action_dim, action_number):
    """PyTorch Linear weight is (out, in); we store the transpose (in, out).
    Weights ~ N(0, 0.1) as in the module; biases ~ U(-1/sqrt(fan_in), ...)."""
    in_dim = state_dim + action_dim
    keys = jax.random.split(key, 12)

    def w(k, fan_in, fan_out):
        return 0.1 * jax.random.normal(k, (fan_in, fan_out), dtype=jnp.float32)

    def b(k, fan_in, fan_out):
        bound = 1.0 / jnp.sqrt(jnp.float32(fan_in))
        return jax.random.uniform(k, (1, fan_out), dtype=jnp.float32,
                                  minval=-bound, maxval=bound)

    return {
        "w1a": w(keys[0], in_dim, HIDDEN),  "b1a": b(keys[1], in_dim, HIDDEN),
        "w2a": w(keys[2], HIDDEN, HIDDEN),  "b2a": b(keys[3], HIDDEN, HIDDEN),
        "w3a": w(keys[4], HIDDEN, action_number), "b3a": b(keys[5], HIDDEN, action_number),
        "w1b": w(keys[6], in_dim, HIDDEN),  "b1b": b(keys[7], in_dim, HIDDEN),
        "w2b": w(keys[8], HIDDEN, HIDDEN),  "b2b": b(keys[9], HIDDEN, HIDDEN),
        "w3b": w(keys[10], HIDDEN, action_number), "b3b": b(keys[11], HIDDEN, action_number),
    }


def reference_forward(s, a, p):
    """Pure-JAX reference using the same bf16-rounded matmul inputs as the
    kernel (f32 accumulate), so the comparison is tight."""
    def rmm(x, w):
        xb = x.astype(jnp.bfloat16).astype(jnp.float32)
        wb = w.astype(jnp.bfloat16).astype(jnp.float32)
        return jnp.dot(xb, wb, precision=jax.lax.Precision.HIGHEST)

    x = jnp.concatenate([s, a], axis=1)
    h = jnp.maximum(rmm(x, p["w1a"]) + p["b1a"], 0.0)
    h = jnp.maximum(rmm(h, p["w2a"]) + p["b2a"], 0.0)
    q1 = rmm(h, p["w3a"]) + p["b3a"]
    g = jnp.maximum(rmm(x, p["w1b"]) + p["b1b"], 0.0)
    g = jnp.maximum(rmm(g, p["w2b"]) + p["b2b"], 0.0)
    q2 = rmm(g, p["w3b"]) + p["b3b"]
    return q1, q2


if __name__ == "__main__":
    batch = 8
    state_dim = 16
    action_dim = 2
    action_number = 2   # TODO(synk): env.action_space.shape[0] comes from RlGame; fixed to 2 here.

    key = jax.random.PRNGKey(0)
    k_s, k_a, k_p = jax.random.split(key, 3)
    s = jax.random.normal(k_s, (batch, state_dim), dtype=jnp.float32)
    a = jax.random.normal(k_a, (batch, action_dim), dtype=jnp.float32)
    params = init_params(k_p, state_dim, action_dim, action_number)
    packed = pack_params(params, state_dim)

    q1, q2 = critic_forward(s, a, packed)
    jax.block_until_ready((q1, q2))

    q1_ref, q2_ref = reference_forward(s, a, params)
    assert q1.shape == (batch, action_number) and q2.shape == (batch, action_number)
    assert jnp.allclose(q1, q1_ref, atol=2e-3, rtol=2e-3)
    assert jnp.allclose(q2, q2_ref, atol=2e-3, rtol=2e-3)

    print("KERNEL_OK")
</pallas_src>

<mosaic_0001>
module attributes {stable_mosaic.version = 11 : i64} {
  func.func @critic_kernel(%arg0: i32, %arg1: memref<8x16xf32, #tpu.memory_space<vmem>>, %arg2: memref<8x2xf32, #tpu.memory_space<vmem>>, %arg3: memref<16x512xbf16, #tpu.memory_space<vmem>>, %arg4: memref<2x512xbf16, #tpu.memory_space<vmem>>, %arg5: memref<1x512xf32, #tpu.memory_space<vmem>>, %arg6: memref<512x256xbf16, #tpu.memory_space<vmem>>, %arg7: memref<1x512xf32, #tpu.memory_space<vmem>>, %arg8: memref<512x2xbf16, #tpu.memory_space<vmem>>, %arg9: memref<1x2xf32, #tpu.memory_space<vmem>>, %arg10: memref<1x2xf32, #tpu.memory_space<vmem>>, %arg11: memref<8x2xf32, #tpu.memory_space<vmem>>, %arg12: memref<8x2xf32, #tpu.memory_space<vmem>>) attributes {dimension_semantics = [#tpu.dimension_semantics<parallel>], iteration_bounds = array<i64: 1>, scalar_prefetch = 0 : i64, scratch_operands = 0 : i64, tpu.core_type = #tpu.core_type<tc>, window_params = [{transform_indices = @transform_0, window_bounds = array<i64: 8, 16>}, {transform_indices = @transform_1, window_bounds = array<i64: 8, 2>}, {pipeline_mode = #tpu.pipeline_mode<synchronous>, transform_indices = @transform_2, window_bounds = array<i64: 16, 512>}, {pipeline_mode = #tpu.pipeline_mode<synchronous>, transform_indices = @transform_3, window_bounds = array<i64: 2, 512>}, {pipeline_mode = #tpu.pipeline_mode<synchronous>, transform_indices = @transform_4, window_bounds = array<i64: 1, 512>}, {pipeline_mode = #tpu.pipeline_mode<synchronous>, transform_indices = @transform_5, window_bounds = array<i64: 512, 256>}, {pipeline_mode = #tpu.pipeline_mode<synchronous>, transform_indices = @transform_6, window_bounds = array<i64: 1, 512>}, {pipeline_mode = #tpu.pipeline_mode<synchronous>, transform_indices = @transform_7, window_bounds = array<i64: 512, 2>}, {pipeline_mode = #tpu.pipeline_mode<synchronous>, transform_indices = @transform_8, window_bounds = array<i64: 1, 2>}, {pipeline_mode = #tpu.pipeline_mode<synchronous>, transform_indices = @transform_9, window_bounds = array<i64: 1, 2>}, {transform_indices = @transform_10, window_bounds = array<i64: 8, 2>}, {transform_indices = @transform_11, window_bounds = array<i64: 8, 2>}]} {
    %c0 = arith.constant 0 : index
    %c0_0 = arith.constant 0 : index
    %0 = vector.load %arg1[%c0, %c0_0] : memref<8x16xf32, #tpu.memory_space<vmem>>, vector<8x16xf32>
    %1 = arith.truncf %0 : vector<8x16xf32> to vector<8x16xbf16>
    %c0_1 = arith.constant 0 : index
    %c0_2 = arith.constant 0 : index
    %2 = vector.load %arg2[%c0_1, %c0_2] : memref<8x2xf32, #tpu.memory_space<vmem>>, vector<8x2xf32>
    %3 = arith.truncf %2 : vector<8x2xf32> to vector<8x2xbf16>
    %c0_3 = arith.constant 0 : index
    %c0_4 = arith.constant 0 : index
    %4 = vector.load %arg3[%c0_3, %c0_4] : memref<16x512xbf16, #tpu.memory_space<vmem>>, vector<16x512xbf16>
    %cst = arith.constant dense<0.000000e+00> : vector<8x512xf32>
    %5 = tpu.matmul %1, %4, %cst {dimension_numbers = #tpu.dot_dimension_numbers<[1], [0], [0], [1], [0, 0, 1, 1], [], []>} : vector<8x16xbf16>, vector<16x512xbf16>, vector<8x512xf32> -> vector<8x512xf32>
    %c0_5 = arith.constant 0 : index
    %c0_6 = arith.constant 0 : index
    %6 = vector.load %arg4[%c0_5, %c0_6] : memref<2x512xbf16, #tpu.memory_space<vmem>>, vector<2x512xbf16>
    %cst_7 = arith.constant dense<0.000000e+00> : vector<8x512xf32>
    %7 = tpu.matmul %3, %6, %cst_7 {dimension_numbers = #tpu.dot_dimension_numbers<[1], [0], [0], [1], [0, 0, 1, 1], [], []>} : vector<8x2xbf16>, vector<2x512xbf16>, vector<8x512xf32> -> vector<8x512xf32>
    %8 = arith.addf %5, %7 : vector<8x512xf32>
    %c0_8 = arith.constant 0 : index
    %c0_9 = arith.constant 0 : index
    %9 = vector.load %arg5[%c0_8, %c0_9] : memref<1x512xf32, #tpu.memory_space<vmem>>, vector<1x512xf32>
    %10 = vector.broadcast %9 : vector<1x512xf32> to vector<8x512xf32>
    %11 = arith.addf %8, %10 : vector<8x512xf32>
    %cst_10 = arith.constant 0.000000e+00 : f32
    %12 = vector.broadcast %cst_10 : f32 to vector<8x512xf32>
    %13 = arith.maximumf %11, %12 : vector<8x512xf32>
    %14 = arith.truncf %13 : vector<8x512xf32> to vector<8x512xbf16>
    %15 = vector.extract_strided_slice %14 {offsets = [0, 0], sizes = [8, 256], strides = [1, 1]} : vector<8x512xbf16> to vector<8x256xbf16>
    %c0_11 = arith.constant 0 : index
    %c0_12 = arith.constant 0 : index
    %16 = vector.load %arg6[%c0_11, %c0_12] : memref<512x256xbf16, #tpu.memory_space<vmem>>, vector<256x256xbf16>
    %cst_13 = arith.constant dense<0.000000e+00> : vector<8x256xf32>
    %17 = tpu.matmul %15, %16, %cst_13 {dimension_numbers = #tpu.dot_dimension_numbers<[1], [0], [0], [1], [0, 0, 1, 1], [], []>} : vector<8x256xbf16>, vector<256x256xbf16>, vector<8x256xf32> -> vector<8x256xf32>
    %c0_14 = arith.constant 0 : index
    %c0_15 = arith.constant 0 : index
    %18 = vector.load %arg7[%c0_14, %c0_15] : memref<1x512xf32, #tpu.memory_space<vmem>>, vector<1x256xf32>
    %19 = vector.broadcast %18 : vector<1x256xf32> to vector<8x256xf32>
    %20 = arith.addf %17, %19 : vector<8x256xf32>
    %21 = vector.extract_strided_slice %14 {offsets = [0, 256], sizes = [8, 256], strides = [1, 1]} : vector<8x512xbf16> to vector<8x256xbf16>
    %c256 = arith.constant 256 : index
    %c0_16 = arith.constant 0 : index
    %22 = vector.load %arg6[%c256, %c0_16] : memref<512x256xbf16, #tpu.memory_space<vmem>>, vector<256x256xbf16>
    %cst_17 = arith.constant dense<0.000000e+00> : vector<8x256xf32>
    %23 = tpu.matmul %21, %22, %cst_17 {dimension_numbers = #tpu.dot_dimension_numbers<[1], [0], [0], [1], [0, 0, 1, 1], [], []>} : vector<8x256xbf16>, vector<256x256xbf16>, vector<8x256xf32> -> vector<8x256xf32>
    %c0_18 = arith.constant 0 : index
    %c256_19 = arith.constant 256 : index
    %24 = vector.load %arg7[%c0_18, %c256_19] : memref<1x512xf32, #tpu.memory_space<vmem>>, vector<1x256xf32>
    %25 = vector.broadcast %24 : vector<1x256xf32> to vector<8x256xf32>
    %26 = arith.addf %23, %25 : vector<8x256xf32>
    %cst_20 = arith.constant 0.000000e+00 : f32
    %27 = vector.broadcast %cst_20 : f32 to vector<8x256xf32>
    %28 = arith.maximumf %20, %27 : vector<8x256xf32>
    %29 = arith.truncf %28 : vector<8x256xf32> to vector<8x256xbf16>
    %cst_21 = arith.constant 0.000000e+00 : f32
    %30 = vector.broadcast %cst_21 : f32 to vector<8x256xf32>
    %31 = arith.maximumf %26, %30 : vector<8x256xf32>
    %32 = arith.truncf %31 : vector<8x256xf32> to vector<8x256xbf16>
    %c0_22 = arith.constant 0 : index
    %c0_23 = arith.constant 0 : index
    %33 = vector.load %arg8[%c0_22, %c0_23] : memref<512x2xbf16, #tpu.memory_space<vmem>>, vector<256x2xbf16>
    %cst_24 = arith.constant dense<0.000000e+00> : vector<8x2xf32>
    %34 = tpu.matmul %29, %33, %cst_24 {dimension_numbers = #tpu.dot_dimension_numbers<[1], [0], [0], [1], [0, 0, 1, 1], [], []>} : vector<8x256xbf16>, vector<256x2xbf16>, vector<8x2xf32> -> vector<8x2xf32>
    %c0_25 = arith.constant 0 : index
    %c0_26 = arith.constant 0 : index
    %35 = vector.load %arg9[%c0_25, %c0_26] : memref<1x2xf32, #tpu.memory_space<vmem>>, vector<1x2xf32>
    %36 = vector.broadcast %35 : vector<1x2xf32> to vector<8x2xf32>
    %37 = arith.addf %34, %36 : vector<8x2xf32>
    %c0_27 = arith.constant 0 : index
    %c0_28 = arith.constant 0 : index
    %38 = vector.load %arg11[%c0_27, %c0_28] : memref<8x2xf32, #tpu.memory_space<vmem>>, vector<8x2xf32>
    tpu.vector_store %arg11[%c0_27, %c0_28], %37 {strides = array<i32>} : memref<8x2xf32, #tpu.memory_space<vmem>>, vector<8x2xf32>,
    %c256_29 = arith.constant 256 : index
    %c0_30 = arith.constant 0 : index
    %39 = vector.load %arg8[%c256_29, %c0_30] : memref<512x2xbf16, #tpu.memory_space<vmem>>, vector<256x2xbf16>
    %cst_31 = arith.constant dense<0.000000e+00> : vector<8x2xf32>
    %40 = tpu.matmul %32, %39, %cst_31 {dimension_numbers = #tpu.dot_dimension_numbers<[1], [0], [0], [1], [0, 0, 1, 1], [], []>} : vector<8x256xbf16>, vector<256x2xbf16>, vector<8x2xf32> -> vector<8x2xf32>
    %c0_32 = arith.constant 0 : index
    %c0_33 = arith.constant 0 : index
    %41 = vector.load %arg10[%c0_32, %c0_33] : memref<1x2xf32, #tpu.memory_space<vmem>>, vector<1x2xf32>
    %42 = vector.broadcast %41 : vector<1x2xf32> to vector<8x2xf32>
    %43 = arith.addf %40, %42 : vector<8x2xf32>
    %c0_34 = arith.constant 0 : index
    %c0_35 = arith.constant 0 : index
    %44 = vector.load %arg12[%c0_34, %c0_35] : memref<8x2xf32, #tpu.memory_space<vmem>>, vector<8x2xf32>
    tpu.vector_store %arg12[%c0_34, %c0_35], %43 {strides = array<i32>} : memref<8x2xf32, #tpu.memory_space<vmem>>, vector<8x2xf32>,
    return
  }
  func.func @transform_0(%arg0: i32) -> (i32, i32) {
    %c0_i32 = arith.constant 0 : i32
    %c0_i32_0 = arith.constant 0 : i32
    return %arg0, %c0_i32 : i32, i32
  }
  func.func @transform_1(%arg0: i32) -> (i32, i32) {
    %c0_i32 = arith.constant 0 : i32
    %c0_i32_0 = arith.constant 0 : i32
    return %arg0, %c0_i32 : i32, i32
  }
  func.func @transform_2(%arg0: i32) -> (i32, i32) {
    %c0_i32 = arith.constant 0 : i32
    %c0_i32_0 = arith.constant 0 : i32
    %c0_i32_1 = arith.constant 0 : i32
    return %c0_i32, %c0_i32_0 : i32, i32
  }
  func.func @transform_3(%arg0: i32) -> (i32, i32) {
    %c0_i32 = arith.constant 0 : i32
    %c0_i32_0 = arith.constant 0 : i32
    %c0_i32_1 = arith.constant 0 : i32
    return %c0_i32, %c0_i32_0 : i32, i32
  }
  func.func @transform_4(%arg0: i32) -> (i32, i32) {
    %c0_i32 = arith.constant 0 : i32
    %c0_i32_0 = arith.constant 0 : i32
    %c0_i32_1 = arith.constant 0 : i32
    return %c0_i32, %c0_i32_0 : i32, i32
  }
  func.func @transform_5(%arg0: i32) -> (i32, i32) {
    %c0_i32 = arith.constant 0 : i32
    %c0_i32_0 = arith.constant 0 : i32
    %c0_i32_1 = arith.constant 0 : i32
    return %c0_i32, %c0_i32_0 : i32, i32
  }
  func.func @transform_6(%arg0: i32) -> (i32, i32) {
    %c0_i32 = arith.constant 0 : i32
    %c0_i32_0 = arith.constant 0 : i32
    %c0_i32_1 = arith.constant 0 : i32
    return %c0_i32, %c0_i32_0 : i32, i32
  }
  func.func @transform_7(%arg0: i32) -> (i32, i32) {
    %c0_i32 = arith.constant 0 : i32
    %c0_i32_0 = arith.constant 0 : i32
    %c0_i32_1 = arith.constant 0 : i32
    return %c0_i32, %c0_i32_0 : i32, i32
  }
  func.func @transform_8(%arg0: i32) -> (i32, i32) {
    %c0_i32 = arith.constant 0 : i32
    %c0_i32_0 = arith.constant 0 : i32
    %c0_i32_1 = arith.constant 0 : i32
    return %c0_i32, %c0_i32_0 : i32, i32
  }
  func.func @transform_9(%arg0: i32) -> (i32, i32) {
    %c0_i32 = arith.constant 0 : i32
    %c0_i32_0 = arith.constant 0 : i32
    %c0_i32_1 = arith.constant 0 : i32
    return %c0_i32, %c0_i32_0 : i32, i32
  }
  func.func @transform_10(%arg0: i32) -> (i32, i32) {
    %c0_i32 = arith.constant 0 : i32
    %c0_i32_0 = arith.constant 0 : i32
    return %arg0, %c0_i32 : i32, i32
  }
  func.func @transform_11(%arg0: i32) -> (i32, i32) {
    %c0_i32 = arith.constant 0 : i32
    %c0_i32_0 = arith.constant 0 : i32
    return %arg0, %c0_i32 : i32, i32
  }
}

</mosaic_0001>

<llo_original>
// kernel: tpu_custom_call.1
$region0: #{tpu_custom_call.1}
  #allocation0 [shape = 'u32[]', space=smem, size = 0x4, offset = 0x4, fixed_abs, tag = 'smem constant byte address 0x4 - core index']
  #allocation1 [shape = 'u32[144,128]{1,0:T(1,128)}', space=vmem, size = 0x12000, scoped, tag = 'internal scratch']
  %s0 = inlined_call_operand.vmem [shape: f32[8,16], index: 0, kind: input, shape index: {}]
  %s1 = inlined_call_operand.vmem [shape: f32[8,2], index: 1, kind: input, shape index: {}]
  %s2 = inlined_call_operand.vmem [shape: bf16[16,512], index: 2, kind: input, shape index: {}]
  %s3 = inlined_call_operand.vmem [shape: bf16[2,512], index: 3, kind: input, shape index: {}]
  %s4 = inlined_call_operand.vmem [shape: f32[1,512], index: 4, kind: input, shape index: {}]
  %s5 = inlined_call_operand.hbm [shape: bf16[512,256], index: 5, kind: input, shape index: {}]
  %s6 = inlined_call_operand.vmem [shape: f32[1,512], index: 6, kind: input, shape index: {}]
  %s7 = inlined_call_operand.vmem [shape: bf16[512,2], index: 7, kind: input, shape index: {}]
  %s8 = inlined_call_operand.vmem [shape: f32[1,2], index: 8, kind: input, shape index: {}]
  %s9 = inlined_call_operand.vmem [shape: f32[1,2], index: 9, kind: input, shape index: {}]
  %s10 = inlined_call_operand.vmem [shape: f32[8,2], index: 10, kind: output, shape index: {0}]
  %s11 = inlined_call_operand.vmem [shape: f32[8,2], index: 11, kind: output, shape index: {1}]
  %12 = xla_tuple %s10, %s11
  %s13 = sld [smem:[#allocation0]]
  $region62: #{tpu_custom_call.1} parent=0
    _
  %s15 = ssub.s32 1, %s13
  %s16 = scalar_select 0, %s15, %s13
  $region1: #{tpu_custom_call.1} parent=0
    #allocation2 [shape = 'u8[262144]{0}', space=vmem, size = 0x40000, scoped, tag = 'input window, operand 5, single buffered']
    #allocation3 [shape = 's32[1]{0}', space=sflag, size = 0x4, scoped, tag = 'scoped memory for tpu_custom_call.1']
    %17 = vsyncpa [#allocation3], 0
    // Predicated region
    $region2: #{tpu_custom_call.1} parent=1 // pred_check
      _
    $region3: #{tpu_custom_call.1} parent=1 // pred_check_branch
      %19 = sbr.rel (0) target = $region5
    $region4: #{tpu_custom_call.1} parent=1 // pred_region
      _
    $region5: #{tpu_custom_call.1} parent=1 // pred_fallthru
      _
    // Predicated region
    $region6: #{tpu_custom_call.1} parent=1 // pred_check
      _
    $region7: #{tpu_custom_call.1} parent=1 // pred_check_branch
      %21 = sbr.rel (0) target = $region9
    $region8: #{tpu_custom_call.1} parent=1 // pred_region
      _
    $region9: #{tpu_custom_call.1} parent=1 // pred_fallthru
      _
    // Predicated region
    $region10: #{tpu_custom_call.1} parent=1 // pred_check
      _
    $region11: #{tpu_custom_call.1} parent=1 // pred_check_branch
      %23 = sbr.rel (0) target = $region13
    $region12: #{tpu_custom_call.1} parent=1 // pred_region
      _
    $region13: #{tpu_custom_call.1} parent=1 // pred_fallthru
      _
    // Predicated region
    $region14: #{tpu_custom_call.1} parent=1 // pred_check
      _
    $region15: #{tpu_custom_call.1} parent=1 // pred_check_branch
      %25 = sbr.rel (0) target = $region17
    $region16: #{tpu_custom_call.1} parent=1 // pred_region
      _
    $region17: #{tpu_custom_call.1} parent=1 // pred_fallthru
      _
    // Predicated region
    $region18: #{tpu_custom_call.1} parent=1 // pred_check
      _
    $region19: #{tpu_custom_call.1} parent=1 // pred_check_branch
      %27 = sbr.rel (0) target = $region21
    $region20: #{tpu_custom_call.1} parent=1 // pred_region
      _
    $region21: #{tpu_custom_call.1} parent=1 // pred_fallthru
      _
    // Predicated region
    $region22: #{tpu_custom_call.1} parent=1 // pred_check
      _
    $region23: #{tpu_custom_call.1} parent=1 // pred_check_branch
      %29 = sbr.rel (0) target = $region25
    $region24: #{tpu_custom_call.1} parent=1 // pred_region
      %s31 = ssub.s32 8192, 8192
      %32 = vsyncadd [#allocation3], %s31
      %s33 = sshll.u32 [#allocation2], 4
      %s34 = int_to_ptr.vmem [resolvable:$true] %s33
      %39 = dma.hbm_to_vmem [thread:$0]  %s5, 8192, %s34, [#allocation3], 128, 128, 8
    $region25: #{tpu_custom_call.1} parent=1 // pred_fallthru
      _
    // Predicated region
    $region26: #{tpu_custom_call.1} parent=1 // pred_check
      _
    $region27: #{tpu_custom_call.1} parent=1 // pred_check_branch
      %41 = sbr.rel (0) target = $region29
    $region28: #{tpu_custom_call.1} parent=1 // pred_region
      _
    $region29: #{tpu_custom_call.1} parent=1 // pred_fallthru
      _
    // Predicated region
    $region30: #{tpu_custom_call.1} parent=1 // pred_check
      _
    $region31: #{tpu_custom_call.1} parent=1 // pred_check_branch
      %43 = sbr.rel (0) target = $region33
    $region32: #{tpu_custom_call.1} parent=1 // pred_region
      _
    $region33: #{tpu_custom_call.1} parent=1 // pred_fallthru
      _
    // Predicated region
    $region34: #{tpu_custom_call.1} parent=1 // pred_check
      _
    $region35: #{tpu_custom_call.1} parent=1 // pred_check_branch
      %45 = sbr.rel (0) target = $region37
    $region36: #{tpu_custom_call.1} parent=1 // pred_region
      _
    $region37: #{tpu_custom_call.1} parent=1 // pred_fallthru
      _
    // Predicated region
    $region38: #{tpu_custom_call.1} parent=1 // pred_check
      _
    $region39: #{tpu_custom_call.1} parent=1 // pred_check_branch
      %47 = sbr.rel (0) target = $region41
    $region40: #{tpu_custom_call.1} parent=1 // pred_region
      _
    $region41: #{tpu_custom_call.1} parent=1 // pred_fallthru
      _
    // Predicated region
    $region42: #{tpu_custom_call.1} parent=1 // pred_check
      _
    $region43: #{tpu_custom_call.1} parent=1 // pred_check_branch
      %49 = sbr.rel (0) target = $region45
    $region44: #{tpu_custom_call.1} parent=1 // pred_region
      %50 = dma.done [#allocation3], 8192
    $region45: #{tpu_custom_call.1} parent=1 // pred_fallthru
      _
    %v52 = vld [vmem:[%s0] sm:$0xff]
    %v53 = vpack.c.bf16 %v52, %v52
    %v54 = vld [vmem:[%s1] sm:$0xff]
    %v55 = vpack.c.bf16 %v54, %v54
    %v56 = vld [vmem:[%s2] sm:$0xff]
    %v57 = vld [vmem:[%s2 + $0x8] sm:$0xff]
    %v58 = vld [vmem:[%s2 + $0x10] sm:$0xff]
    %v59 = vld [vmem:[%s2 + $0x18] sm:$0xff]
    %v60 = vld [vmem:[%s3] sm:$0xf]
    %v63 = vunpack.c.l.s4 1966171168
    %v64 = vunpack.c.0.s8 %v63
    %v65 = vlaneseq
    %v66 = vshrl.u32 %v65, 7
    %v67 = vsub.s32 %v64, %v66
    %v68 = vrot.slane %v60, %v67
    %v69 = vcombine.high %v68, %v68
    %v71 = vunpack.c.l.s4 1966171168
    %v72 = vunpack.c.0.s8 %v71
    %v73 = vlaneseq
    %v74 = vshrl.u32 %v73, 7
    %v75 = vsub.s32 %v72, %v74
    %v76 = vrot.slane %v68, %v75
    %v78 = vunpack.c.l.s4 1966171168
    %v79 = vunpack.c.0.s8 %v78
    %v80 = vlaneseq
    %v81 = vshrl.u32 %v80, 7
    %v82 = vsub.s32 %v79, %v81
    %v83 = vrot.slane %v69, %v82
    %v84 = vcombine.high %v76, %v76
    %v85 = vcombine.high %v83, %v83
    %vm86 = vcmask 15360
    %v88 = vsel %vm86, %v55, 0
    %vm90 = vcmask 1040384
    %v92 = vsel %vm90, %v76, 0
    %v95 = vsel %vm90, %v83, 0
    %v98 = vsel %vm90, %v84, 0
    %v101 = vsel %vm90, %v85, 0
    %103 = vmatprep.subr.bf16.mxu0 0
    %104 = vmatpush1.bf16.msra.mxu0 0
    %105 = vmatprep.subr.bf16.mxu0 0
    %106 = vmatpush1.bf16.msra.mxu0 0
    %107 = vmatprep.subr.bf16.mxu0 0
    %108 = vmatpush1.bf16.msra.mxu0 0
    %109 = vmatprep.subr.bf16.mxu0 0
    %110 = vmatpush1.bf16.msra.mxu0 0
    %111 = vmatprep.subr.bf16.mxu0 0
    %112 = vmatpush1.bf16.msra.mxu0 0
    %113 = vmatprep.subr.bf16.mxu0 0
    %114 = vmatpush1.bf16.msra.mxu0 0
    %115 = vmatprep.subr.bf16.mxu0 0
    %116 = vmatpush1.bf16.msra.mxu0 0
    %117 = vmatprep.subr.bf16.mxu0 %v95
    %118 = vmatpush1.bf16.msra.mxu0 %v92
    %119 = vmatprep.subr.bf16.mxu0 0
    %120 = vmatpush2.bf16.msra.mxu0 0
    %121 = vmatprep.subr.bf16.mxu0 0
    %122 = vmatpush2.bf16.msra.mxu0 0
    %123 = vmatprep.subr.bf16.mxu0 0
    %124 = vmatpush2.bf16.msra.mxu0 0
    %125 = vmatprep.subr.bf16.mxu0 0
    %126 = vmatpush2.bf16.msra.mxu0 0
    %127 = vmatprep.subr.bf16.mxu0 0
    %128 = vmatpush2.bf16.msra.mxu0 0
    %129 = vmatprep.subr.bf16.mxu0 0
    %130 = vmatpush2.bf16.msra.mxu0 0
    %131 = vmatprep.subr.bf16.mxu0 0
    %132 = vmatpush2.bf16.msra.mxu0 0
    %133 = vmatprep.subr.bf16.mxu0 0
    %134 = vmatpush2.bf16.msra.mxu0 0
    %135 = vmatprep.mubr.bf16.mxu0 0
    %136 = vmatmul.mubr.bf16.gmra.mxu0 %v88
    %v137 = vpop.f32.mrf.mxu0
    %v138 = vadd.f32 0.0, %v137
    %v139 = vpop.f32.mrf.mxu0
    %v140 = vadd.f32 0.0, %v139
    %v141 = vpop.f32.mrf.mxu0
    %v142 = vpop.f32.mrf.mxu0
    %143 = vdwg.mxu0
    %144 = vmatprep.subr.bf16.mxu0 0
    %145 = vmatpush1.bf16.msra.mxu0 0
    %146 = vmatprep.subr.bf16.mxu0 0
    %147 = vmatpush1.bf16.msra.mxu0 0
    %148 = vmatprep.subr.bf16.mxu0 0
    %149 = vmatpush1.bf16.msra.mxu0 0
    %150 = vmatprep.subr.bf16.mxu0 0
    %151 = vmatpush1.bf16.msra.mxu0 0
    %152 = vmatprep.subr.bf16.mxu0 0
    %153 = vmatpush1.bf16.msra.mxu0 0
    %154 = vmatprep.subr.bf16.mxu0 0
    %155 = vmatpush1.bf16.msra.mxu0 0
    %156 = vmatprep.subr.bf16.mxu0 0
    %157 = vmatpush1.bf16.msra.mxu0 0
    %158 = vmatprep.subr.bf16.mxu0 %v101
    %159 = vmatpush1.bf16.msra.mxu0 %v98
    %160 = vmatprep.subr.bf16.mxu0 0
    %161 = vmatpush2.bf16.msra.mxu0 0
    %162 = vmatprep.subr.bf16.mxu0 0
    %163 = vmatpush2.bf16.msra.mxu0 0
    %164 = vmatprep.subr.bf16.mxu0 0
    %165 = vmatpush2.bf16.msra.mxu0 0
    %166 = vmatprep.subr.bf16.mxu0 0
    %167 = vmatpush2.bf16.msra.mxu0 0
    %168 = vmatprep.subr.bf16.mxu0 0
    %169 = vmatpush2.bf16.msra.mxu0 0
    %170 = vmatprep.subr.bf16.mxu0 0
    %171 = vmatpush2.bf16.msra.mxu0 0
    %172 = vmatprep.subr.bf16.mxu0 0
    %173 = vmatpush2.bf16.msra.mxu0 0
    %174 = vmatprep.subr.bf16.mxu0 0
    %175 = vmatpush2.bf16.msra.mxu0 0
    %176 = vmatprep.mubr.bf16.mxu0 0
    %177 = vmatmul.mubr.bf16.gmra.mxu0 %v88
    %v178 = vpop.f32.mrf.mxu0
    %v179 = vadd.f32 0.0, %v178
    %v180 = vpop.f32.mrf.mxu0
    %v181 = vadd.f32 0.0, %v180
    %v182 = vpop.f32.mrf.mxu0
    %v183 = vpop.f32.mrf.mxu0
    %184 = vdwg.mxu0
    %v189 = vunpack.c.l.b16 %v56
    %v190 = vunpack.c.h.b16 %v56
    %v191 = vunpack.c.l.b16 %v57
    %v192 = vunpack.c.h.b16 %v57
    %v193 = vunpack.c.l.b16 %v58
    %v194 = vunpack.c.h.b16 %v58
    %v195 = vunpack.c.l.b16 %v59
    %v196 = vunpack.c.h.b16 %v59
    %v197 = vpack.c.b16 %v193, %v189
    %v198 = vpack.c.b16 %v194, %v190
    %v199 = vpack.c.b16 %v195, %v191
    %v200 = vpack.c.b16 %v196, %v192
    %vm205 = vcmask 130048
    %v207 = vsel %vm205, %v53, 0
    %209 = vmatprep.subr.bf16.mxu0 0
    %210 = vmatpush1.bf16.msra.mxu0 0
    %211 = vmatprep.subr.bf16.mxu0 0
    %212 = vmatpush1.bf16.msra.mxu0 0
    %213 = vmatprep.subr.bf16.mxu0 0
    %214 = vmatpush1.bf16.msra.mxu0 0
    %215 = vmatprep.subr.bf16.mxu0 0
    %216 = vmatpush1.bf16.msra.mxu0 0
    %217 = vmatprep.subr.bf16.mxu0 0
    %218 = vmatpush1.bf16.msra.mxu0 0
    %219 = vmatprep.subr.bf16.mxu0 0
    %220 = vmatpush1.bf16.msra.mxu0 0
    %221 = vmatprep.subr.bf16.mxu0 0
    %222 = vmatpush1.bf16.msra.mxu0 0
    %223 = vmatprep.subr.bf16.mxu0 %v198
    %224 = vmatpush1.bf16.msra.mxu0 %v197
    %225 = vmatprep.subr.bf16.mxu0 0
    %226 = vmatpush2.bf16.msra.mxu0 0
    %227 = vmatprep.subr.bf16.mxu0 0
    %228 = vmatpush2.bf16.msra.mxu0 0
    %229 = vmatprep.subr.bf16.mxu0 0
    %230 = vmatpush2.bf16.msra.mxu0 0
    %231 = vmatprep.subr.bf16.mxu0 0
    %232 = vmatpush2.bf16.msra.mxu0 0
    %233 = vmatprep.subr.bf16.mxu0 0
    %234 = vmatpush2.bf16.msra.mxu0 0
    %235 = vmatprep.subr.bf16.mxu0 0
    %236 = vmatpush2.bf16.msra.mxu0 0
    %237 = vmatprep.subr.bf16.mxu0 0
    %238 = vmatpush2.bf16.msra.mxu0 0
    %239 = vmatprep.subr.bf16.mxu0 0
    %240 = vmatpush2.bf16.msra.mxu0 0
    %241 = vmatprep.mubr.bf16.mxu0 0
    %242 = vmatmul.mubr.bf16.gmra.mxu0 %v207
    %v243 = vpop.f32.mrf.mxu0
    %v244 = vadd.f32 %v138, %v243
    %v245 = vpop.f32.mrf.mxu0
    %v246 = vadd.f32 %v140, %v245
    %v247 = vpop.f32.mrf.mxu0
    %v248 = vpop.f32.mrf.mxu0
    %249 = vdwg.mxu0
    %250 = vmatprep.subr.bf16.mxu0 0
    %251 = vmatpush1.bf16.msra.mxu0 0
    %252 = vmatprep.subr.bf16.mxu0 0
    %253 = vmatpush1.bf16.msra.mxu0 0
    %254 = vmatprep.subr.bf16.mxu0 0
    %255 = vmatpush1.bf16.msra.mxu0 0
    %256 = vmatprep.subr.bf16.mxu0 0
    %257 = vmatpush1.bf16.msra.mxu0 0
    %258 = vmatprep.subr.bf16.mxu0 0
    %259 = vmatpush1.bf16.msra.mxu0 0
    %260 = vmatprep.subr.bf16.mxu0 0
    %261 = vmatpush1.bf16.msra.mxu0 0
    %262 = vmatprep.subr.bf16.mxu0 0
    %263 = vmatpush1.bf16.msra.mxu0 0
    %264 = vmatprep.subr.bf16.mxu0 %v200
    %265 = vmatpush1.bf16.msra.mxu0 %v199
    %266 = vmatprep.subr.bf16.mxu0 0
    %267 = vmatpush2.bf16.msra.mxu0 0
    %268 = vmatprep.subr.bf16.mxu0 0
    %269 = vmatpush2.bf16.msra.mxu0 0
    %270 = vmatprep.subr.bf16.mxu0 0
    %271 = vmatpush2.bf16.msra.mxu0 0
    %272 = vmatprep.subr.bf16.mxu0 0
    %273 = vmatpush2.bf16.msra.mxu0 0
    %274 = vmatprep.subr.bf16.mxu0 0
    %275 = vmatpush2.bf16.msra.mxu0 0
    %276 = vmatprep.subr.bf16.mxu0 0
    %277 = vmatpush2.bf16.msra.mxu0 0
    %278 = vmatprep.subr.bf16.mxu0 0
    %279 = vmatpush2.bf16.msra.mxu0 0
    %280 = vmatprep.subr.bf16.mxu0 0
    %281 = vmatpush2.bf16.msra.mxu0 0
    %282 = vmatprep.mubr.bf16.mxu0 0
    %283 = vmatmul.mubr.bf16.gmra.mxu0 %v207
    %v284 = vpop.f32.mrf.mxu0
    %v285 = vadd.f32 %v179, %v284
    %v286 = vpop.f32.mrf.mxu0
    %v287 = vadd.f32 %v181, %v286
    %v288 = vpop.f32.mrf.mxu0
    %v289 = vpop.f32.mrf.mxu0
    %290 = vdwg.mxu0
    %v291 = vld [vmem:[%s4] sm:$0xf]
    %v293 = vlaneseq
    %v294 = vshrl.u32 %v293, 7
    %v295 = vsub.s32 0, %v294
    %v296 = vrot.slane %v291, %v295
    %v297 = vlaneseq
    %v298 = vshrl.u32 %v297, 7
    %v299 = vsub.s32 1, %v298
    %v300 = vrot.slane %v291, %v299
    %v301 = vlaneseq
    %v302 = vshrl.u32 %v301, 7
    %v303 = vsub.s32 2, %v302
    %v304 = vrot.slane %v291, %v303
    %v305 = vlaneseq
    %v306 = vshrl.u32 %v305, 7
    %v307 = vsub.s32 3, %v306
    %v308 = vrot.slane %v291, %v307
    %v313 = vadd.f32 %v244, %v296
    %v314 = vadd.f32 %v246, %v300
    %v315 = vadd.f32 %v285, %v304
    %v316 = vadd.f32 %v287, %v308
    %v317 = vmax.f32 %v313, 0.0
    %v318 = vmax.f32 %v314, 0.0
    %v319 = vmax.f32 %v315, 0.0
    %v320 = vmax.f32 %v316, 0.0
    %v321 = vpack.c.bf16 %v317, %v317
    %v322 = vpack.c.bf16 %v318, %v318
    %v323 = vpack.c.bf16 %v319, %v319
    %v324 = vpack.c.bf16 %v320, %v320
    %v325 = vld [vmem:[#allocation2] sm:$0xff]
    %v326 = vld [vmem:[#allocation2 + $0x8] sm:$0xff]
    %v327 = vld [vmem:[#allocation2 + $0x10] sm:$0xff]
    %v328 = vld [vmem:[#allocation2 + $0x18] sm:$0xff]
    %v329 = vld [vmem:[#allocation2 + $0x20] sm:$0xff]
    %v330 = vld [vmem:[#allocation2 + $0x28] sm:$0xff]
    %v331 = vld [vmem:[#allocation2 + $0x30] sm:$0xff]
    %v332 = vld [vmem:[#allocation2 + $0x38] sm:$0xff]
    %v333 = vld [vmem:[#allocation2 + $0x40] sm:$0xff]
    %v334 = vld [vmem:[#allocation2 + $0x48] sm:$0xff]
    %v335 = vld [vmem:[#allocation2 + $0x50] sm:$0xff]
    %v336 = vld [vmem:[#allocation2 + $0x58] sm:$0xff]
    %v337 = vld [vmem:[#allocation2 + $0x60] sm:$0xff]
    %v338 = vld [vmem:[#allocation2 + $0x68] sm:$0xff]
    %v339 = vld [vmem:[#allocation2 + $0x70] sm:$0xff]
    %v340 = vld [vmem:[#allocation2 + $0x78] sm:$0xff]
    %v341 = vld [vmem:[#allocation2 + $0x80] sm:$0xff]
    %v342 = vld [vmem:[#allocation2 + $0x88] sm:$0xff]
    %v343 = vld [vmem:[#allocation2 + $0x90] sm:$0xff]
    %v344 = vld [vmem:[#allocation2 + $0x98] sm:$0xff]
    %v345 = vld [vmem:[#allocation2 + $0xa0] sm:$0xff]
    %v346 = vld [vmem:[#allocation2 + $0xa8] sm:$0xff]
    %v347 = vld [vmem:[#allocation2 + $0xb0] sm:$0xff]
    %v348 = vld [vmem:[#allocation2 + $0xb8] sm:$0xff]
    %v349 = vld [vmem:[#allocation2 + $0xc0] sm:$0xff]
    %v350 = vld [vmem:[#allocation2 + $0xc8] sm:$0xff]
    %v351 = vld [vmem:[#allocation2 + $0xd0] sm:$0xff]
    %v352 = vld [vmem:[#allocation2 + $0xd8] sm:$0xff]
    %v353 = vld [vmem:[#allocation2 + $0xe0] sm:$0xff]
    %v354 = vld [vmem:[#allocation2 + $0xe8] sm:$0xff]
    %v355 = vld [vmem:[#allocation2 + $0xf0] sm:$0xff]
    %v356 = vld [vmem:[#allocation2 + $0xf8] sm:$0xff]
    %v357 = vld [vmem:[%s6] sm:$0x3]
    %v359 = vlaneseq
    %v360 = vshrl.u32 %v359, 7
    %v361 = vsub.s32 0, %v360
    %v362 = vrot.slane %v357, %v361
    %v363 = vlaneseq
    %v364 = vshrl.u32 %v363, 7
    %v365 = vsub.s32 1, %v364
    %v366 = vrot.slane %v357, %v365
    %v401 = vunpack.c.l.b16 %v325
    %v402 = vunpack.c.h.b16 %v325
    %v403 = vunpack.c.l.b16 %v326
    %v404 = vunpack.c.h.b16 %v326
    %v405 = vunpack.c.l.b16 %v327
    %v406 = vunpack.c.h.b16 %v327
    %v407 = vunpack.c.l.b16 %v328
    %v408 = vunpack.c.h.b16 %v328
    %v409 = vunpack.c.l.b16 %v329
    %v410 = vunpack.c.h.b16 %v329
    %v411 = vunpack.c.l.b16 %v330
    %v412 = vunpack.c.h.b16 %v330
    %v413 = vunpack.c.l.b16 %v331
    %v414 = vunpack.c.h.b16 %v331
    %v415 = vunpack.c.l.b16 %v332
    %v416 = vunpack.c.h.b16 %v332
    %v417 = vunpack.c.l.b16 %v333
    %v418 = vunpack.c.h.b16 %v333
    %v419 = vunpack.c.l.b16 %v334
    %v420 = vunpack.c.h.b16 %v334
    %v421 = vunpack.c.l.b16 %v335
    %v422 = vunpack.c.h.b16 %v335
    %v423 = vunpack.c.l.b16 %v336
    %v424 = vunpack.c.h.b16 %v336
    %v425 = vunpack.c.l.b16 %v337
    %v426 = vunpack.c.h.b16 %v337
    %v427 = vunpack.c.l.b16 %v338
    %v428 = vunpack.c.h.b16 %v338
    %v429 = vunpack.c.l.b16 %v339
    %v430 = vunpack.c.h.b16 %v339
    %v431 = vunpack.c.l.b16 %v340
    %v432 = vunpack.c.h.b16 %v340
    %v433 = vunpack.c.l.b16 %v341
    %v434 = vunpack.c.h.b16 %v341
    %v435 = vunpack.c.l.b16 %v342
    %v436 = vunpack.c.h.b16 %v342
    %v437 = vunpack.c.l.b16 %v343
    %v438 = vunpack.c.h.b16 %v343
    %v439 = vunpack.c.l.b16 %v344
    %v440 = vunpack.c.h.b16 %v344
    %v441 = vunpack.c.l.b16 %v345
    %v442 = vunpack.c.h.b16 %v345
    %v443 = vunpack.c.l.b16 %v346
    %v444 = vunpack.c.h.b16 %v346
    %v445 = vunpack.c.l.b16 %v347
    %v446 = vunpack.c.h.b16 %v347
    %v447 = vunpack.c.l.b16 %v348
    %v448 = vunpack.c.h.b16 %v348
    %v449 = vunpack.c.l.b16 %v349
    %v450 = vunpack.c.h.b16 %v349
    %v451 = vunpack.c.l.b16 %v350
    %v452 = vunpack.c.h.b16 %v350
    %v453 = vunpack.c.l.b16 %v351
    %v454 = vunpack.c.h.b16 %v351
    %v455 = vunpack.c.l.b16 %v352
    %v456 = vunpack.c.h.b16 %v352
    %v457 = vunpack.c.l.b16 %v353
    %v458 = vunpack.c.h.b16 %v353
    %v459 = vunpack.c.l.b16 %v354
    %v460 = vunpack.c.h.b16 %v354
    %v461 = vunpack.c.l.b16 %v355
    %v462 = vunpack.c.h.b16 %v355
    %v463 = vunpack.c.l.b16 %v356
    %v464 = vunpack.c.h.b16 %v356
    %v465 = vpack.c.b16 %v403, %v401
    %v466 = vpack.c.b16 %v404, %v402
    %v467 = vpack.c.b16 %v407, %v405
    %v468 = vpack.c.b16 %v408, %v406
    %v469 = vpack.c.b16 %v411, %v409
    %v470 = vpack.c.b16 %v412, %v410
    %v471 = vpack.c.b16 %v415, %v413
    %v472 = vpack.c.b16 %v416, %v414
    %v473 = vpack.c.b16 %v419, %v417
    %v474 = vpack.c.b16 %v420, %v418
    %v475 = vpack.c.b16 %v423, %v421
    %v476 = vpack.c.b16 %v424, %v422
    %v477 = vpack.c.b16 %v427, %v425
    %v478 = vpack.c.b16 %v428, %v426
    %v479 = vpack.c.b16 %v431, %v429
    %v480 = vpack.c.b16 %v432, %v430
    %v481 = vpack.c.b16 %v435, %v433
    %v482 = vpack.c.b16 %v436, %v434
    %v483 = vpack.c.b16 %v439, %v437
    %v484 = vpack.c.b16 %v440, %v438
    %v485 = vpack.c.b16 %v443, %v441
    %v486 = vpack.c.b16 %v444, %v442
    %v487 = vpack.c.b16 %v447, %v445
    %v488 = vpack.c.b16 %v448, %v446
    %v489 = vpack.c.b16 %v451, %v449
    %v490 = vpack.c.b16 %v452, %v450
    %v491 = vpack.c.b16 %v455, %v453
    %v492 = vpack.c.b16 %v456, %v454
    %v493 = vpack.c.b16 %v459, %v457
    %v494 = vpack.c.b16 %v460, %v458
    %v495 = vpack.c.b16 %v463, %v461
    %v496 = vpack.c.b16 %v464, %v462
    %529 = vmatprep.subr.bf16.mxu0 %v480
    %530 = vmatpush1.bf16.msra.mxu0 %v479
    %531 = vmatprep.subr.bf16.mxu0 %v478
    %532 = vmatpush1.bf16.msra.mxu0 %v477
    %533 = vmatprep.subr.bf16.mxu0 %v476
    %534 = vmatpush1.bf16.msra.mxu0 %v475
    %535 = vmatprep.subr.bf16.mxu0 %v474
    %536 = vmatpush1.bf16.msra.mxu0 %v473
    %537 = vmatprep.subr.bf16.mxu0 %v472
    %538 = vmatpush1.bf16.msra.mxu0 %v471
    %539 = vmatprep.subr.bf16.mxu0 %v470
    %540 = vmatpush1.bf16.msra.mxu0 %v469
    %541 = vmatprep.subr.bf16.mxu0 %v468
    %542 = vmatpush1.bf16.msra.mxu0 %v467
    %543 = vmatprep.subr.bf16.mxu0 %v466
    %544 = vmatpush1.bf16.msra.mxu0 %v465
    %545 = vmatprep.subr.bf16.mxu0 %v496
    %546 = vmatpush2.bf16.msra.mxu0 %v495
    %547 = vmatprep.subr.bf16.mxu0 %v494
    %548 = vmatpush2.bf16.msra.mxu0 %v493
    %549 = vmatprep.subr.bf16.mxu0 %v492
    %550 = vmatpush2.bf16.msra.mxu0 %v491
    %551 = vmatprep.subr.bf16.mxu0 %v490
    %552 = vmatpush2.bf16.msra.mxu0 %v489
    %553 = vmatprep.subr.bf16.mxu0 %v488
    %554 = vmatpush2.bf16.msra.mxu0 %v487
    %555 = vmatprep.subr.bf16.mxu0 %v486
    %556 = vmatpush2.bf16.msra.mxu0 %v485
    %557 = vmatprep.subr.bf16.mxu0 %v484
    %558 = vmatpush2.bf16.msra.mxu0 %v483
    %559 = vmatprep.subr.bf16.mxu0 %v482
    %560 = vmatpush2.bf16.msra.mxu0 %v481
    %561 = vmatprep.mubr.bf16.mxu0 %v322
    %562 = vmatmul.mubr.bf16.gmra.mxu0 %v321
    %v563 = vpop.f32.mrf.mxu0
    %v564 = vadd.f32 %v362, %v563
    %v565 = vpop.f32.mrf.mxu0
    %v566 = vadd.f32 %v366, %v565
    %v567 = vpop.f32.mrf.mxu0
    %v568 = vpop.f32.mrf.mxu0
    %569 = vdwg.mxu0
    %v570 = vld [vmem:[#allocation2 + $0x100] sm:$0xff]
    %v571 = vld [vmem:[#allocation2 + $0x108] sm:$0xff]
    %v572 = vld [vmem:[#allocation2 + $0x110] sm:$0xff]
    %v573 = vld [vmem:[#allocation2 + $0x118] sm:$0xff]
    %v574 = vld [vmem:[#allocation2 + $0x120] sm:$0xff]
    %v575 = vld [vmem:[#allocation2 + $0x128] sm:$0xff]
    %v576 = vld [vmem:[#allocation2 + $0x130] sm:$0xff]
    %v577 = vld [vmem:[#allocation2 + $0x138] sm:$0xff]
    %v578 = vld [vmem:[#allocation2 + $0x140] sm:$0xff]
    %v579 = vld [vmem:[#allocation2 + $0x148] sm:$0xff]
    %v580 = vld [vmem:[#allocation2 + $0x150] sm:$0xff]
    %v581 = vld [vmem:[#allocation2 + $0x158] sm:$0xff]
    %v582 = vld [vmem:[#allocation2 + $0x160] sm:$0xff]
    %v583 = vld [vmem:[#allocation2 + $0x168] sm:$0xff]
    %v584 = vld [vmem:[#allocation2 + $0x170] sm:$0xff]
    %v585 = vld [vmem:[#allocation2 + $0x178] sm:$0xff]
    %v586 = vld [vmem:[#allocation2 + $0x180] sm:$0xff]
    %v587 = vld [vmem:[#allocation2 + $0x188] sm:$0xff]
    %v588 = vld [vmem:[#allocation2 + $0x190] sm:$0xff]
    %v589 = vld [vmem:[#allocation2 + $0x198] sm:$0xff]
    %v590 = vld [vmem:[#allocation2 + $0x1a0] sm:$0xff]
    %v591 = vld [vmem:[#allocation2 + $0x1a8] sm:$0xff]
    %v592 = vld [vmem:[#allocation2 + $0x1b0] sm:$0xff]
    %v593 = vld [vmem:[#allocation2 + $0x1b8] sm:$0xff]
    %v594 = vld [vmem:[#allocation2 + $0x1c0] sm:$0xff]
    %v595 = vld [vmem:[#allocation2 + $0x1c8] sm:$0xff]
    %v596 = vld [vmem:[#allocation2 + $0x1d0] sm:$0xff]
    %v597 = vld [vmem:[#allocation2 + $0x1d8] sm:$0xff]
    %v598 = vld [vmem:[#allocation2 + $0x1e0] sm:$0xff]
    %v599 = vld [vmem:[#allocation2 + $0x1e8] sm:$0xff]
    %v600 = vld [vmem:[#allocation2 + $0x1f0] sm:$0xff]
    %v601 = vld [vmem:[#allocation2 + $0x1f8] sm:$0xff]
    %v602 = vld [vmem:[%s6 + $0x2] sm:$0x3]
    %v604 = vlaneseq
    %v605 = vshrl.u32 %v604, 7
    %v606 = vsub.s32 0, %v605
    %v607 = vrot.slane %v602, %v606
    %v608 = vlaneseq
    %v609 = vshrl.u32 %v608, 7
    %v610 = vsub.s32 1, %v609
    %v611 = vrot.slane %v602, %v610
    %v646 = vunpack.c.l.b16 %v570
    %v647 = vunpack.c.h.b16 %v570
    %v648 = vunpack.c.l.b16 %v571
    %v649 = vunpack.c.h.b16 %v571
    %v650 = vunpack.c.l.b16 %v572
    %v651 = vunpack.c.h.b16 %v572
    %v652 = vunpack.c.l.b16 %v573
    %v653 = vunpack.c.h.b16 %v573
    %v654 = vunpack.c.l.b16 %v574
    %v655 = vunpack.c.h.b16 %v574
    %v656 = vunpack.c.l.b16 %v575
    %v657 = vunpack.c.h.b16 %v575
    %v658 = vunpack.c.l.b16 %v576
    %v659 = vunpack.c.h.b16 %v576
    %v660 = vunpack.c.l.b16 %v577
    %v661 = vunpack.c.h.b16 %v577
    %v662 = vunpack.c.l.b16 %v578
    %v663 = vunpack.c.h.b16 %v578
    %v664 = vunpack.c.l.b16 %v579
    %v665 = vunpack.c.h.b16 %v579
    %v666 = vunpack.c.l.b16 %v580
    %v667 = vunpack.c.h.b16 %v580
    %v668 = vunpack.c.l.b16 %v581
    %v669 = vunpack.c.h.b16 %v581
    %v670 = vunpack.c.l.b16 %v582
    %v671 = vunpack.c.h.b16 %v582
    %v672 = vunpack.c.l.b16 %v583
    %v673 = vunpack.c.h.b16 %v583
    %v674 = vunpack.c.l.b16 %v584
    %v675 = vunpack.c.h.b16 %v584
    %v676 = vunpack.c.l.b16 %v585
    %v677 = vunpack.c.h.b16 %v585
    %v678 = vunpack.c.l.b16 %v586
    %v679 = vunpack.c.h.b16 %v586
    %v680 = vunpack.c.l.b16 %v587
    %v681 = vunpack.c.h.b16 %v587
    %v682 = vunpack.c.l.b16 %v588
    %v683 = vunpack.c.h.b16 %v588
    %v684 = vunpack.c.l.b16 %v589
    %v685 = vunpack.c.h.b16 %v589
    %v686 = vunpack.c.l.b16 %v590
    %v687 = vunpack.c.h.b16 %v590
    %v688 = vunpack.c.l.b16 %v591
    %v689 = vunpack.c.h.b16 %v591
    %v690 = vunpack.c.l.b16 %v592
    %v691 = vunpack.c.h.b16 %v592
    %v692 = vunpack.c.l.b16 %v593
    %v693 = vunpack.c.h.b16 %v593
    %v694 = vunpack.c.l.b16 %v594
    %v695 = vunpack.c.h.b16 %v594
    %v696 = vunpack.c.l.b16 %v595
    %v697 = vunpack.c.h.b16 %v595
    %v698 = vunpack.c.l.b16 %v596
    %v699 = vunpack.c.h.b16 %v596
    %v700 = vunpack.c.l.b16 %v597
    %v701 = vunpack.c.h.b16 %v597
    %v702 = vunpack.c.l.b16 %v598
    %v703 = vunpack.c.h.b16 %v598
    %v704 = vunpack.c.l.b16 %v599
    %v705 = vunpack.c.h.b16 %v599
    %v706 = vunpack.c.l.b16 %v600
    %v707 = vunpack.c.h.b16 %v600
    %v708 = vunpack.c.l.b16 %v601
    %v709 = vunpack.c.h.b16 %v601
    %v710 = vpack.c.b16 %v648, %v646
    %v711 = vpack.c.b16 %v649, %v647
    %v712 = vpack.c.b16 %v652, %v650
    %v713 = vpack.c.b16 %v653, %v651
    %v714 = vpack.c.b16 %v656, %v654
    %v715 = vpack.c.b16 %v657, %v655
    %v716 = vpack.c.b16 %v660, %v658
    %v717 = vpack.c.b16 %v661, %v659
    %v718 = vpack.c.b16 %v664, %v662
    %v719 = vpack.c.b16 %v665, %v663
    %v720 = vpack.c.b16 %v668, %v666
    %v721 = vpack.c.b16 %v669, %v667
    %v722 = vpack.c.b16 %v672, %v670
    %v723 = vpack.c.b16 %v673, %v671
    %v724 = vpack.c.b16 %v676, %v674
    %v725 = vpack.c.b16 %v677, %v675
    %v726 = vpack.c.b16 %v680, %v678
    %v727 = vpack.c.b16 %v681, %v679
    %v728 = vpack.c.b16 %v684, %v682
    %v729 = vpack.c.b16 %v685, %v683
    %v730 = vpack.c.b16 %v688, %v686
    %v731 = vpack.c.b16 %v689, %v687
    %v732 = vpack.c.b16 %v692, %v690
    %v733 = vpack.c.b16 %v693, %v691
    %v734 = vpack.c.b16 %v696, %v694
    %v735 = vpack.c.b16 %v697, %v695
    %v736 = vpack.c.b16 %v700, %v698
    %v737 = vpack.c.b16 %v701, %v699
    %v738 = vpack.c.b16 %v704, %v702
    %v739 = vpack.c.b16 %v705, %v703
    %v740 = vpack.c.b16 %v708, %v706
    %v741 = vpack.c.b16 %v709, %v707
    %774 = vmatprep.subr.bf16.mxu0 %v725
    %775 = vmatpush1.bf16.msra.mxu0 %v724
    %776 = vmatprep.subr.bf16.mxu0 %v723
    %777 = vmatpush1.bf16.msra.mxu0 %v722
    %778 = vmatprep.subr.bf16.mxu0 %v721
    %779 = vmatpush1.bf16.msra.mxu0 %v720
    %780 = vmatprep.subr.bf16.mxu0 %v719
    %781 = vmatpush1.bf16.msra.mxu0 %v718
    %782 = vmatprep.subr.bf16.mxu0 %v717
    %783 = vmatpush1.bf16.msra.mxu0 %v716
    %784 = vmatprep.subr.bf16.mxu0 %v715
    %785 = vmatpush1.bf16.msra.mxu0 %v714
    %786 = vmatprep.subr.bf16.mxu0 %v713
    %787 = vmatpush1.bf16.msra.mxu0 %v712
    %788 = vmatprep.subr.bf16.mxu0 %v711
    %789 = vmatpush1.bf16.msra.mxu0 %v710
    %790 = vmatprep.subr.bf16.mxu0 %v741
    %791 = vmatpush2.bf16.msra.mxu0 %v740
    %792 = vmatprep.subr.bf16.mxu0 %v739
    %793 = vmatpush2.bf16.msra.mxu0 %v738
    %794 = vmatprep.subr.bf16.mxu0 %v737
    %795 = vmatpush2.bf16.msra.mxu0 %v736
    %796 = vmatprep.subr.bf16.mxu0 %v735
    %797 = vmatpush2.bf16.msra.mxu0 %v734
    %798 = vmatprep.subr.bf16.mxu0 %v733
    %799 = vmatpush2.bf16.msra.mxu0 %v732
    %800 = vmatprep.subr.bf16.mxu0 %v731
    %801 = vmatpush2.bf16.msra.mxu0 %v730
    %802 = vmatprep.subr.bf16.mxu0 %v729
    %803 = vmatpush2.bf16.msra.mxu0 %v728
    %804 = vmatprep.subr.bf16.mxu0 %v727
    %805 = vmatpush2.bf16.msra.mxu0 %v726
    %806 = vmatprep.mubr.bf16.mxu0 %v324
    %807 = vmatmul.mubr.bf16.gmra.mxu0 %v323
    %v808 = vpop.f32.mrf.mxu0
    %v809 = vadd.f32 %v607, %v808
    %v810 = vpop.f32.mrf.mxu0
    %v811 = vadd.f32 %v611, %v810
    %v812 = vpop.f32.mrf.mxu0
    %v813 = vpop.f32.mrf.mxu0
    %814 = vdwg.mxu0
    %v815 = vmax.f32 %v564, 0.0
    %v816 = vmax.f32 %v566, 0.0
    %v817 = vpack.c.bf16 %v815, %v815
    %v818 = vpack.c.bf16 %v816, %v816
    %v819 = vmax.f32 %v809, 0.0
    %v820 = vmax.f32 %v811, 0.0
    %v821 = vpack.c.bf16 %v819, %v819
    %v822 = vpack.c.bf16 %v820, %v820
    %v823 = vld [vmem:[%s7] sm:$0xf]
    %v824 = vld [vmem:[%s7 + $0x4] sm:$0xf]
    %v825 = vld [vmem:[%s7 + $0x8] sm:$0xf]
    %v826 = vld [vmem:[%s7 + $0xc] sm:$0xf]
    %v827 = vld [vmem:[%s7 + $0x10] sm:$0xf]
    %v828 = vld [vmem:[%s7 + $0x14] sm:$0xf]
    %v829 = vld [vmem:[%s7 + $0x18] sm:$0xf]
    %v830 = vld [vmem:[%s7 + $0x1c] sm:$0xf]
    %v831 = vld [vmem:[%s7 + $0x20] sm:$0xf]
    %v832 = vld [vmem:[%s7 + $0x24] sm:$0xf]
    %v833 = vld [vmem:[%s7 + $0x28] sm:$0xf]
    %v834 = vld [vmem:[%s7 + $0x2c] sm:$0xf]
    %v835 = vld [vmem:[%s7 + $0x30] sm:$0xf]
    %v836 = vld [vmem:[%s7 + $0x34] sm:$0xf]
    %v837 = vld [vmem:[%s7 + $0x38] sm:$0xf]
    %v838 = vld [vmem:[%s7 + $0x3c] sm:$0xf]
    %v839 = vld [vmem:[%s7 + $0x40] sm:$0xf]
    %v840 = vld [vmem:[%s7 + $0x44] sm:$0xf]
    %v841 = vld [vmem:[%s7 + $0x48] sm:$0xf]
    %v842 = vld [vmem:[%s7 + $0x4c] sm:$0xf]
    %v843 = vld [vmem:[%s7 + $0x50] sm:$0xf]
    %v844 = vld [vmem:[%s7 + $0x54] sm:$0xf]
    %v845 = vld [vmem:[%s7 + $0x58] sm:$0xf]
    %v846 = vld [vmem:[%s7 + $0x5c] sm:$0xf]
    %v847 = vld [vmem:[%s7 + $0x60] sm:$0xf]
    %v848 = vld [vmem:[%s7 + $0x64] sm:$0xf]
    %v849 = vld [vmem:[%s7 + $0x68] sm:$0xf]
    %v850 = vld [vmem:[%s7 + $0x6c] sm:$0xf]
    %v851 = vld [vmem:[%s7 + $0x70] sm:$0xf]
    %v852 = vld [vmem:[%s7 + $0x74] sm:$0xf]
    %v853 = vld [vmem:[%s7 + $0x78] sm:$0xf]
    %v854 = vld [vmem:[%s7 + $0x7c] sm:$0xf]
    %v855 = vld [vmem:[%s8] sm:$0x1]
    %v857 = vlaneseq
    %v858 = vshrl.u32 %v857, 7
    %v859 = vsub.s32 0, %v858
    %v860 = vrot.slane %v855, %v859
    %v894 = vunpack.c.l.b16 %v823
    %v895 = vunpack.c.l.b16 %v824
    %v896 = vunpack.c.l.b16 %v825
    %v897 = vunpack.c.l.b16 %v826
    %v898 = vunpack.c.l.b16 %v827
    %v899 = vunpack.c.l.b16 %v828
    %v900 = vunpack.c.l.b16 %v829
    %v901 = vunpack.c.l.b16 %v830
    %v902 = vunpack.c.l.b16 %v831
    %v903 = vunpack.c.l.b16 %v832
    %v904 = vunpack.c.l.b16 %v833
    %v905 = vunpack.c.l.b16 %v834
    %v906 = vunpack.c.l.b16 %v835
    %v907 = vunpack.c.l.b16 %v836
    %v908 = vunpack.c.l.b16 %v837
    %v909 = vunpack.c.l.b16 %v838
    %v910 = vunpack.c.l.b16 %v839
    %v911 = vunpack.c.l.b16 %v840
    %v912 = vunpack.c.l.b16 %v841
    %v913 = vunpack.c.l.b16 %v842
    %v914 = vunpack.c.l.b16 %v843
    %v915 = vunpack.c.l.b16 %v844
    %v916 = vunpack.c.l.b16 %v845
    %v917 = vunpack.c.l.b16 %v846
    %v918 = vunpack.c.l.b16 %v847
    %v919 = vunpack.c.l.b16 %v848
    %v920 = vunpack.c.l.b16 %v849
    %v921 = vunpack.c.l.b16 %v850
    %v922 = vunpack.c.l.b16 %v851
    %v923 = vunpack.c.l.b16 %v852
    %v924 = vunpack.c.l.b16 %v853
    %v925 = vunpack.c.l.b16 %v854
    %v926 = vpack.c.b16 %v895, %v894
    %v927 = vpack.c.b16 %v897, %v896
    %v928 = vpack.c.b16 %v899, %v898
    %v929 = vpack.c.b16 %v901, %v900
    %v930 = vpack.c.b16 %v903, %v902
    %v931 = vpack.c.b16 %v905, %v904
    %v932 = vpack.c.b16 %v907, %v906
    %v933 = vpack.c.b16 %v909, %v908
    %v934 = vpack.c.b16 %v911, %v910
    %v935 = vpack.c.b16 %v913, %v912
    %v936 = vpack.c.b16 %v915, %v914
    %v937 = vpack.c.b16 %v917, %v916
    %v938 = vpack.c.b16 %v919, %v918
    %v939 = vpack.c.b16 %v921, %v920
    %v940 = vpack.c.b16 %v923, %v922
    %v941 = vpack.c.b16 %v925, %v924
    %958 = vmatprep.subr.bf16.mxu0 0
    %959 = vmatpush1.bf16.msra.mxu0 %v933
    %960 = vmatprep.subr.bf16.mxu0 0
    %961 = vmatpush1.bf16.msra.mxu0 %v932
    %962 = vmatprep.subr.bf16.mxu0 0
    %963 = vmatpush1.bf16.msra.mxu0 %v931
    %964 = vmatprep.subr.bf16.mxu0 0
    %965 = vmatpush1.bf16.msra.mxu0 %v930
    %966 = vmatprep.subr.bf16.mxu0 0
    %967 = vmatpush1.bf16.msra.mxu0 %v929
    %968 = vmatprep.subr.bf16.mxu0 0
    %969 = vmatpush1.bf16.msra.mxu0 %v928
    %970 = vmatprep.subr.bf16.mxu0 0
    %971 = vmatpush1.bf16.msra.mxu0 %v927
    %972 = vmatprep.subr.bf16.mxu0 0
    %973 = vmatpush1.bf16.msra.mxu0 %v926
    %974 = vmatprep.subr.bf16.mxu0 0
    %975 = vmatpush2.bf16.msra.mxu0 %v941
    %976 = vmatprep.subr.bf16.mxu0 0
    %977 = vmatpush2.bf16.msra.mxu0 %v940
    %978 = vmatprep.subr.bf16.mxu0 0
    %979 = vmatpush2.bf16.msra.mxu0 %v939
    %980 = vmatprep.subr.bf16.mxu0 0
    %981 = vmatpush2.bf16.msra.mxu0 %v938
    %982 = vmatprep.subr.bf16.mxu0 0
    %983 = vmatpush2.bf16.msra.mxu0 %v937
    %984 = vmatprep.subr.bf16.mxu0 0
    %985 = vmatpush2.bf16.msra.mxu0 %v936
    %986 = vmatprep.subr.bf16.mxu0 0
    %987 = vmatpush2.bf16.msra.mxu0 %v935
    %988 = vmatprep.subr.bf16.mxu0 0
    %989 = vmatpush2.bf16.msra.mxu0 %v934
    %990 = vmatprep.mubr.bf16.mxu0 %v818
    %991 = vmatmul.mubr.bf16.gmra.mxu0 %v817
    %v992 = vpop.f32.mrf.mxu0
    %v993 = vadd.f32 %v860, %v992
    %v994 = vpop.f32.mrf.mxu0
    %v995 = vpop.f32.mrf.mxu0
    %v996 = vpop.f32.mrf.mxu0
    %997 = vdwg.mxu0
    %998 = vst.msk [vmem:[%s10] sm:$0xff] %vm86, %v993
    %v999 = vld [vmem:[%s7 + $0x80] sm:$0xf]
    %v1000 = vld [vmem:[%s7 + $0x84] sm:$0xf]
    %v1001 = vld [vmem:[%s7 + $0x88] sm:$0xf]
    %v1002 = vld [vmem:[%s7 + $0x8c] sm:$0xf]
    %v1003 = vld [vmem:[%s7 + $0x90] sm:$0xf]
    %v1004 = vld [vmem:[%s7 + $0x94] sm:$0xf]
    %v1005 = vld [vmem:[%s7 + $0x98] sm:$0xf]
    %v1006 = vld [vmem:[%s7 + $0x9c] sm:$0xf]
    %v1007 = vld [vmem:[%s7 + $0xa0] sm:$0xf]
    %v1008 = vld [vmem:[%s7 + $0xa4] sm:$0xf]
    %v1009 = vld [vmem:[%s7 + $0xa8] sm:$0xf]
    %v1010 = vld [vmem:[%s7 + $0xac] sm:$0xf]
    %v1011 = vld [vmem:[%s7 + $0xb0] sm:$0xf]
    %v1012 = vld [vmem:[%s7 + $0xb4] sm:$0xf]
    %v1013 = vld [vmem:[%s7 + $0xb8] sm:$0xf]
    %v1014 = vld [vmem:[%s7 + $0xbc] sm:$0xf]
    %v1015 = vld [vmem:[%s7 + $0xc0] sm:$0xf]
    %v1016 = vld [vmem:[%s7 + $0xc4] sm:$0xf]
    %v1017 = vld [vmem:[%s7 + $0xc8] sm:$0xf]
    %v1018 = vld [vmem:[%s7 + $0xcc] sm:$0xf]
    %v1019 = vld [vmem:[%s7 + $0xd0] sm:$0xf]
    %v1020 = vld [vmem:[%s7 + $0xd4] sm:$0xf]
    %v1021 = vld [vmem:[%s7 + $0xd8] sm:$0xf]
    %v1022 = vld [vmem:[%s7 + $0xdc] sm:$0xf]
    %v1023 = vld [vmem:[%s7 + $0xe0] sm:$0xf]
    %v1024 = vld [vmem:[%s7 + $0xe4] sm:$0xf]
    %v1025 = vld [vmem:[%s7 + $0xe8] sm:$0xf]
    %v1026 = vld [vmem:[%s7 + $0xec] sm:$0xf]
    %v1027 = vld [vmem:[%s7 + $0xf0] sm:$0xf]
    %v1028 = vld [vmem:[%s7 + $0xf4] sm:$0xf]
    %v1029 = vld [vmem:[%s7 + $0xf8] sm:$0xf]
    %v1030 = vld [vmem:[%s7 + $0xfc] sm:$0xf]
    %v1031 = vld [vmem:[%s9] sm:$0x1]
    %v1033 = vlaneseq
    %v1034 = vshrl.u32 %v1033, 7
    %v1035 = vsub.s32 0, %v1034
    %v1036 = vrot.slane %v1031, %v1035
    %v1070 = vunpack.c.l.b16 %v999
    %v1071 = vunpack.c.l.b16 %v1000
    %v1072 = vunpack.c.l.b16 %v1001
    %v1073 = vunpack.c.l.b16 %v1002
    %v1074 = vunpack.c.l.b16 %v1003
    %v1075 = vunpack.c.l.b16 %v1004
    %v1076 = vunpack.c.l.b16 %v1005
    %v1077 = vunpack.c.l.b16 %v1006
    %v1078 = vunpack.c.l.b16 %v1007
    %v1079 = vunpack.c.l.b16 %v1008
    %v1080 = vunpack.c.l.b16 %v1009
    %v1081 = vunpack.c.l.b16 %v1010
    %v1082 = vunpack.c.l.b16 %v1011
    %v1083 = vunpack.c.l.b16 %v1012
    %v1084 = vunpack.c.l.b16 %v1013
    %v1085 = vunpack.c.l.b16 %v1014
    %v1086 = vunpack.c.l.b16 %v1015
    %v1087 = vunpack.c.l.b16 %v1016
    %v1088 = vunpack.c.l.b16 %v1017
    %v1089 = vunpack.c.l.b16 %v1018
    %v1090 = vunpack.c.l.b16 %v1019
    %v1091 = vunpack.c.l.b16 %v1020
    %v1092 = vunpack.c.l.b16 %v1021
    %v1093 = vunpack.c.l.b16 %v1022
    %v1094 = vunpack.c.l.b16 %v1023
    %v1095 = vunpack.c.l.b16 %v1024
    %v1096 = vunpack.c.l.b16 %v1025
    %v1097 = vunpack.c.l.b16 %v1026
    %v1098 = vunpack.c.l.b16 %v1027
    %v1099 = vunpack.c.l.b16 %v1028
    %v1100 = vunpack.c.l.b16 %v1029
    %v1101 = vunpack.c.l.b16 %v1030
    %v1102 = vpack.c.b16 %v1071, %v1070
    %v1103 = vpack.c.b16 %v1073, %v1072
    %v1104 = vpack.c.b16 %v1075, %v1074
    %v1105 = vpack.c.b16 %v1077, %v1076
    %v1106 = vpack.c.b16 %v1079, %v1078
    %v1107 = vpack.c.b16 %v1081, %v1080
    %v1108 = vpack.c.b16 %v1083, %v1082
    %v1109 = vpack.c.b16 %v1085, %v1084
    %v1110 = vpack.c.b16 %v1087, %v1086
    %v1111 = vpack.c.b16 %v1089, %v1088
    %v1112 = vpack.c.b16 %v1091, %v1090
    %v1113 = vpack.c.b16 %v1093, %v1092
    %v1114 = vpack.c.b16 %v1095, %v1094
    %v1115 = vpack.c.b16 %v1097, %v1096
    %v1116 = vpack.c.b16 %v1099, %v1098
    %v1117 = vpack.c.b16 %v1101, %v1100
    %1134 = vmatprep.subr.bf16.mxu0 0
    %1135 = vmatpush1.bf16.msra.mxu0 %v1109
    %1136 = vmatprep.subr.bf16.mxu0 0
    %1137 = vmatpush1.bf16.msra.mxu0 %v1108
    %1138 = vmatprep.subr.bf16.mxu0 0
    %1139 = vmatpush1.bf16.msra.mxu0 %v1107
    %1140 = vmatprep.subr.bf16.mxu0 0
    %1141 = vmatpush1.bf16.msra.mxu0 %v1106
    %1142 = vmatprep.subr.bf16.mxu0 0
    %1143 = vmatpush1.bf16.msra.mxu0 %v1105
    %1144 = vmatprep.subr.bf16.mxu0 0
    %1145 = vmatpush1.bf16.msra.mxu0 %v1104
    %1146 = vmatprep.subr.bf16.mxu0 0
    %1147 = vmatpush1.bf16.msra.mxu0 %v1103
    %1148 = vmatprep.subr.bf16.mxu0 0
    %1149 = vmatpush1.bf16.msra.mxu0 %v1102
    %1150 = vmatprep.subr.bf16.mxu0 0
    %1151 = vmatpush2.bf16.msra.mxu0 %v1117
    %1152 = vmatprep.subr.bf16.mxu0 0
    %1153 = vmatpush2.bf16.msra.mxu0 %v1116
    %1154 = vmatprep.subr.bf16.mxu0 0
    %1155 = vmatpush2.bf16.msra.mxu0 %v1115
    %1156 = vmatprep.subr.bf16.mxu0 0
    %1157 = vmatpush2.bf16.msra.mxu0 %v1114
    %1158 = vmatprep.subr.bf16.mxu0 0
    %1159 = vmatpush2.bf16.msra.mxu0 %v1113
    %1160 = vmatprep.subr.bf16.mxu0 0
    %1161 = vmatpush2.bf16.msra.mxu0 %v1112
    %1162 = vmatprep.subr.bf16.mxu0 0
    %1163 = vmatpush2.bf16.msra.mxu0 %v1111
    %1164 = vmatprep.subr.bf16.mxu0 0
    %1165 = vmatpush2.bf16.msra.mxu0 %v1110
    %1166 = vmatprep.mubr.bf16.mxu0 %v822
    %1167 = vmatmul.mubr.bf16.gmra.mxu0 %v821
    %v1168 = vpop.f32.mrf.mxu0
    %v1169 = vadd.f32 %v1036, %v1168
    %v1170 = vpop.f32.mrf.mxu0
    %v1171 = vpop.f32.mrf.mxu0
    %v1172 = vpop.f32.mrf.mxu0
    %1173 = vdwg.mxu0
    %1174 = vst.msk [vmem:[%s11] sm:$0xff] %vm86, %v1169
    // Predicated region
    $region46: #{tpu_custom_call.1} parent=1 // pred_check
      _
    $region47: #{tpu_custom_call.1} parent=1 // pred_check_branch
      %1176 = sbr.rel (0) target = $region49
    $region48: #{tpu_custom_call.1} parent=1 // pred_region
      _
    $region49: #{tpu_custom_call.1} parent=1 // pred_fallthru
      _
    // Predicated region
    $region50: #{tpu_custom_call.1} parent=1 // pred_check
      _
    $region51: #{tpu_custom_call.1} parent=1 // pred_check_branch
      %1178 = sbr.rel (0) target = $region53
    $region52: #{tpu_custom_call.1} parent=1 // pred_region
      _
    $region53: #{tpu_custom_call.1} parent=1 // pred_fallthru
      _
    // Predicated region
    $region54: #{tpu_custom_call.1} parent=1 // pred_check
      _
    $region55: #{tpu_custom_call.1} parent=1 // pred_check_branch
      %1180 = sbr.rel (0) target = $region57
    $region56: #{tpu_custom_call.1} parent=1 // pred_region
      _
    $region57: #{tpu_custom_call.1} parent=1 // pred_fallthru
      _
    // Predicated region
    $region58: #{tpu_custom_call.1} parent=1 // pred_check
      _
    $region59: #{tpu_custom_call.1} parent=1 // pred_check_branch
      %1182 = sbr.rel (0) target = $region61
    $region60: #{tpu_custom_call.1} parent=1 // pred_region
      _
    $region61: #{tpu_custom_call.1} parent=1 // pred_fallthru
      _
    %1183 = vsyncpa [#allocation3], 1

</llo_original>
